<compile_context>
chip_gen: v6e
topology: v6e:2x2x1
jax: 0.10.0
libtpu: 0.0.40
codegen_flags: <defaults>
</compile_context>

<pallas_src>
import jax
import jax.numpy as jnp
from jax.experimental import pallas as pl
from jax.experimental.pallas import tpu as pltpu

_SUBLANE = 8
_NEG_CLAMP = -1e30  # finite stand-in for log(0): keeps 0-mask matmul entries at 0 (no -inf*0 NaN)


def _round_up(x, m):
    return (x + m - 1) // m * m


# ---------------------------------------------------------------------------
# Deterministic rebuild of ProtoTree._init_tree (preorder node indexing).
# ---------------------------------------------------------------------------
def build_prototree(depth):
    nodes = {}

    def rec(i, d):
        if d == depth:
            nodes[i] = dict(index=i, leaf=True, size=1)
            return i
        li = rec(i + 1, d + 1)
        ri = rec(i + 1 + nodes[li]["size"], d + 1)
        nodes[i] = dict(index=i, leaf=False, left=li, right=ri,
                        size=1 + nodes[li]["size"] + nodes[ri]["size"])
        return i

    root = rec(0, 0)
    branch_ids = sorted(i for i, n in nodes.items() if not n["leaf"])
    # TODO(synk): torch builds _out_map by iterating a python set() (arbitrary
    # order); for a trained checkpoint the prototype->branch mapping must be
    # imported from the module, not re-derived.  We fix the deterministic
    # preorder-sorted choice here.
    out_map = {b: k for k, b in enumerate(branch_ids)}
    num_protos = len(branch_ids)

    anc_sign = {}          # node idx -> per-prototype sign of *strict* ancestors
    leaves_in_order = []   # left-to-right traversal order

    def walk(idx, sign_vec):
        anc_sign[idx] = list(sign_vec)
        n = nodes[idx]
        if n["leaf"]:
            leaves_in_order.append(idx)
            return
        p = out_map[idx]
        lv = list(sign_vec); lv[p] = -1.0
        rv = list(sign_vec); rv[p] = +1.0
        walk(n["left"], lv)
        walk(n["right"], rv)

    walk(root, [0.0] * num_protos)
    return nodes, root, branch_ids, leaves_in_order, out_map, anc_sign


# ---------------------------------------------------------------------------
# Pallas kernel: spatial max + fused log-space path/pa matmuls + leaf matmul.
# ---------------------------------------------------------------------------
def _prototree_kernel(act_ref, path_mask_ref, leaf_ref, node_mask_ref,
                      probs_ref, sim_ref, pa_ref):
    # act_ref      : (TB, P, S) f32 -- natural layout (no prototype padding)
    # path_mask_ref: (2P, L)    f32 -- rows 0..P-1: right-subtree mask,
    #                                   rows P..2P-1: left-subtree mask
    # leaf_ref     : (L, C)     f32 -- leaf class distributions
    # node_mask_ref: (2P, Nn)   f32 -- same stacking, per-node ancestor masks
    act = act_ref[...]
    # k_for_topk = 1  ->  mean(top-1 over spatial) == max over spatial
    sim = jnp.max(act, axis=-1)                                # (TB, P)
    sim_ref[...] = sim

    # EUP logs; clamp so masked-out (-inf * 0) terms stay 0 in the matmul.
    log_s = jnp.maximum(jnp.log(sim), _NEG_CLAMP)
    log_1ms = jnp.maximum(jnp.log(1.0 - sim), _NEG_CLAMP)
    lhs = jnp.concatenate([log_s, log_1ms], axis=-1)           # (TB, 2P)

    # Single K = 2P contraction for the leaf path probabilities.
    log_path = jnp.dot(lhs, path_mask_ref[...],
                       preferred_element_type=jnp.float32)     # (TB, L)
    path_prob = jnp.exp(log_path)

    # probs[b, c] = sum_l path_prob[b, l] * leaf_dist[l, c]
    probs_ref[...] = jnp.dot(path_prob, leaf_ref[...],
                             preferred_element_type=jnp.float32)

    # pa[b, n] = prod over ancestors of node n (right: s, left: 1-s)
    log_pa = jnp.dot(lhs, node_mask_ref[...],
                     preferred_element_type=jnp.float32)       # (TB, Nn)
    pa_ref[...] = jnp.exp(log_pa)


def prototree_forward(prototype_activations, sign_leaf, leaf_dist, node_sign,
                      node_indices, branch_ids, out_map, *, batch_tile=128):
    """sign_leaf: (L, P) in {-1,0,+1}; leaf_dist: (L, C); node_sign: (Nn, P)."""
    B, P, H, W = prototype_activations.shape
    S = H * W
    L, C = leaf_dist.shape
    Nn = node_sign.shape[0]

    # Batch tile: shrink for small B (don't pad B up to the tile); aim for
    # >= 4 grid steps at realistic B so the pipeline overlaps and the v7x
    # "parallel" batch axis can shard across both TensorCores.
    TB = min(batch_tile, _round_up(B, _SUBLANE))
    if B >= 4 * _SUBLANE:
        TB = min(TB, _round_up(-(-B // 4), _SUBLANE))
    Bp = _round_up(B, TB)

    # Natural (B, P, S) layout (free reshape); pad only the batch axis.
    # Pad value 0.5 keeps log()/log(1-.) finite in padded rows (trimmed later).
    act = prototype_activations.reshape(B, P, S).astype(jnp.float32)
    act = jnp.pad(act, ((0, Bp - B), (0, 0), (0, 0)), constant_values=0.5)

    sign_leaf = jnp.asarray(sign_leaf, jnp.float32)            # (L, P)
    pos = (sign_leaf > 0).astype(jnp.float32).T                # (P, L) right-subtree
    neg = (sign_leaf < 0).astype(jnp.float32).T                # (P, L) left-subtree
    path_mask = jnp.concatenate([pos, neg], axis=0)            # (2P, L)

    node_sign = jnp.asarray(node_sign, jnp.float32)            # (Nn, P)
    node_pos = (node_sign > 0).astype(jnp.float32).T           # (P, Nn)
    node_neg = (node_sign < 0).astype(jnp.float32).T
    node_mask = jnp.concatenate([node_pos, node_neg], axis=0)  # (2P, Nn)

    leaf = leaf_dist.astype(jnp.float32)                       # (L, C)
    # TODO(synk): for large trees (depth >= 8) the resident masks / leaf_dist
    # could be bf16 with pl.Buffered(1) single buffering to save VMEM.

    grid = (Bp // TB,)

    # Cost estimate from TRUE sizes (not padded) so XLA doesn't over-serialize.
    flops = int(2 * B * (2 * P * L + L * C + 2 * P * Nn) + B * P * S)
    transcendentals = int(B * (2 * P + L + Nn))
    bytes_accessed = int(4 * (B * P * S + 2 * P * (L + Nn) + L * C
                              + B * (P + C + Nn)))

    # Explicit VMEM budget: double-buffered act + output blocks, resident masks,
    # margin; floor 16 MiB, cap 24 MiB (safe under v7x's 64 MiB physical VMEM).
    block_bytes = (4 * (TB * P * S + TB * (C + P + Nn)) * 2
                   + 4 * (2 * P * (L + Nn) + L * C) * 2)
    vmem_limit = int(min(max(4 * block_bytes, 16 << 20), 24 << 20))

    probs_pad, sim_pad, pa_pad = pl.pallas_call(
        _prototree_kernel,
        out_shape=(jax.ShapeDtypeStruct((Bp, C), jnp.float32),
                   jax.ShapeDtypeStruct((Bp, P), jnp.float32),
                   jax.ShapeDtypeStruct((Bp, Nn), jnp.float32)),
        grid_spec=pltpu.PrefetchScalarGridSpec(
            num_scalar_prefetch=0,
            grid=grid,
            in_specs=[
                pl.BlockSpec((TB, P, S), lambda i: (i, 0, 0)),  # activations (pipelined)
                pl.BlockSpec((2 * P, L), lambda i: (0, 0)),     # path masks (resident)
                pl.BlockSpec((L, C), lambda i: (0, 0)),         # leaf dist (resident)
                pl.BlockSpec((2 * P, Nn), lambda i: (0, 0)),    # node masks (resident)
            ],
            out_specs=[
                pl.BlockSpec((TB, C), lambda i: (i, 0)),
                pl.BlockSpec((TB, P), lambda i: (i, 0)),
                pl.BlockSpec((TB, Nn), lambda i: (i, 0)),
            ],
        ),
        compiler_params=pltpu.CompilerParams(
            dimension_semantics=("parallel",),
            vmem_limit_bytes=vmem_limit),
        cost_estimate=pl.CostEstimate(flops=flops,
                                      transcendentals=transcendentals,
                                      bytes_accessed=bytes_accessed),
    )(act, path_mask, leaf, node_mask)

    probs = probs_pad[:B]
    sim = sim_pad[:B]
    pa_all = pa_pad[:B]

    # non-log-probability tree: head returns log(probs); log taken on the
    # trimmed slab so no -inf is ever materialized in padded lanes.
    logits = jnp.log(probs)

    pa_tensor = {idx: pa_all[:, j:j + 1] for j, idx in enumerate(node_indices)}
    ps = {b: sim[:, out_map[b]:out_map[b] + 1] for b in branch_ids}
    return {"logits": logits, "pa_tensor": pa_tensor, "ps": ps,
            "similarity_score_to_each_prototype": sim}


# ---------------------------------------------------------------------------
# Pure-JAX reference (mirrors the recursive torch tree) for validation.
# ---------------------------------------------------------------------------
def reference_forward(act4d, nodes, root, out_map, leaf_dist_by_idx):
    B = act4d.shape[0]
    act = act4d.reshape(B, act4d.shape[1], -1)
    sim = jnp.max(act, axis=-1)
    pa = {root: jnp.ones((B,), jnp.float32)}

    def rec(idx):
        n = nodes[idx]
        if n["leaf"]:
            d = leaf_dist_by_idx[idx]
            return jnp.broadcast_to(d[None, :], (B, d.shape[0]))
        p = out_map[idx]
        psv = sim[:, p]
        pa[n["left"]] = (1.0 - psv) * pa[idx]
        pa[n["right"]] = psv * pa[idx]
        return ((1.0 - psv)[:, None] * rec(n["left"])
                + psv[:, None] * rec(n["right"]))

    logits = jnp.log(rec(root))
    return logits, pa, sim


if __name__ == "__main__":
    # Module config: num_classes=10, depth=3, log_probabilities=False,
    # disable_derivative_free_leaf_optim=True, k_for_topk=1.
    # TODO(synk): log_probabilities=True (logsumexp tree) and k_for_topk>1
    # (mean of top-k spatial) are not implemented in-kernel.
    depth, num_classes = 3, 10
    nodes, root, branch_ids, leaves_in_order, out_map, anc_sign = build_prototree(depth)
    P = len(branch_ids)          # 7 prototypes / branches
    L = len(leaves_in_order)     # 8 leaves

    B, H, W = 2, 4, 4
    key = jax.random.PRNGKey(0)
    k_act, k_leaf = jax.random.split(key)

    # Prototype activations (similarities in (0,1), as produced upstream by ProtoPNet).
    x = jax.random.uniform(k_act, (B, P, H, W), dtype=jnp.float32,
                           minval=0.05, maxval=0.95)

    # Leaf parameters: randn(num_classes) per leaf; distribution = softmax(dp - max(dp)).
    leaf_keys = jax.random.split(k_leaf, L)
    leaf_dist_rows = []
    leaf_dist_by_idx = {}
    for kk, lidx in zip(leaf_keys, leaves_in_order):
        dp = jax.random.normal(kk, (num_classes,), dtype=jnp.float32)
        dist = jax.nn.softmax(dp - jnp.max(dp))
        leaf_dist_rows.append(dist)
        leaf_dist_by_idx[lidx] = dist
    leaf_dist = jnp.stack(leaf_dist_rows, axis=0)                          # (L, C)
    sign_leaf = jnp.asarray([anc_sign[l] for l in leaves_in_order],
                            dtype=jnp.float32)                             # (L, P)
    node_indices = sorted(anc_sign.keys())
    node_sign = jnp.asarray([anc_sign[i] for i in node_indices],
                            dtype=jnp.float32)                             # (Nnodes, P)

    out = prototree_forward(x, sign_leaf, leaf_dist, node_sign,
                            node_indices, branch_ids, out_map, batch_tile=128)
    logits = jax.block_until_ready(out["logits"])

    ref_logits, ref_pa, ref_sim = reference_forward(x, nodes, root, out_map, leaf_dist_by_idx)

    assert logits.shape == (B, num_classes)
    assert jnp.allclose(logits, ref_logits, rtol=1e-4, atol=1e-4), "logits mismatch"
    assert jnp.allclose(out["similarity_score_to_each_prototype"], ref_sim,
                        rtol=1e-6, atol=1e-6), "sim mismatch"
    for idx in node_indices:
        assert jnp.allclose(out["pa_tensor"][idx][:, 0], ref_pa[idx],
                            rtol=1e-5, atol=1e-5), f"pa mismatch at node {idx}"
    for b in branch_ids:
        assert jnp.allclose(out["ps"][b][:, 0], ref_sim[:, out_map[b]],
                            rtol=1e-6, atol=1e-6), f"ps mismatch at branch {b}"
    print("KERNEL_OK")
</pallas_src>

<mosaic_0001>
module attributes {stable_mosaic.version = 11 : i64} {
  func.func @_prototree_kernel(%arg0: i32, %arg1: memref<8x7x16xf32, #tpu.memory_space<vmem>>, %arg2: memref<14x8xf32, #tpu.memory_space<vmem>>, %arg3: memref<8x10xf32, #tpu.memory_space<vmem>>, %arg4: memref<14x15xf32, #tpu.memory_space<vmem>>, %arg5: memref<8x10xf32, #tpu.memory_space<vmem>>, %arg6: memref<8x7xf32, #tpu.memory_space<vmem>>, %arg7: memref<8x15xf32, #tpu.memory_space<vmem>>) attributes {dimension_semantics = [#tpu.dimension_semantics<parallel>], iteration_bounds = array<i64: 1>, scalar_prefetch = 0 : i64, scratch_operands = 0 : i64, tpu.core_type = #tpu.core_type<tc>, window_params = [{transform_indices = @transform_0, window_bounds = array<i64: 8, 7, 16>}, {pipeline_mode = #tpu.pipeline_mode<synchronous>, transform_indices = @transform_1, window_bounds = array<i64: 14, 8>}, {pipeline_mode = #tpu.pipeline_mode<synchronous>, transform_indices = @transform_2, window_bounds = array<i64: 8, 10>}, {pipeline_mode = #tpu.pipeline_mode<synchronous>, transform_indices = @transform_3, window_bounds = array<i64: 14, 15>}, {transform_indices = @transform_4, window_bounds = array<i64: 8, 10>}, {transform_indices = @transform_5, window_bounds = array<i64: 8, 7>}, {transform_indices = @transform_6, window_bounds = array<i64: 8, 15>}]} {
    %c0 = arith.constant 0 : index
    %c0_0 = arith.constant 0 : index
    %c0_1 = arith.constant 0 : index
    %0 = vector.load %arg1[%c0, %c0_0, %c0_1] : memref<8x7x16xf32, #tpu.memory_space<vmem>>, vector<8x7x16xf32>
    %cst = arith.constant dense<0xFF800000> : vector<8x7xf32>
    %1 = vector.multi_reduction <maximumf>, %0, %cst [2] : vector<8x7x16xf32> to vector<8x7xf32>
    %c0_2 = arith.constant 0 : index
    %c0_3 = arith.constant 0 : index
    %2 = vector.load %arg6[%c0_2, %c0_3] : memref<8x7xf32, #tpu.memory_space<vmem>>, vector<8x7xf32>
    tpu.vector_store %arg6[%c0_2, %c0_3], %1 {strides = array<i32>} : memref<8x7xf32, #tpu.memory_space<vmem>>, vector<8x7xf32>,
    %3 = math.log %1 : vector<8x7xf32>
    %cst_4 = arith.constant -1.000000e+30 : f32
    %4 = vector.broadcast %cst_4 : f32 to vector<8x7xf32>
    %5 = arith.maximumf %3, %4 : vector<8x7xf32>
    %cst_5 = arith.constant 1.000000e+00 : f32
    %6 = vector.broadcast %cst_5 : f32 to vector<8x7xf32>
    %7 = arith.subf %6, %1 : vector<8x7xf32>
    %8 = math.log %7 : vector<8x7xf32>
    %cst_6 = arith.constant -1.000000e+30 : f32
    %9 = vector.broadcast %cst_6 : f32 to vector<8x7xf32>
    %10 = arith.maximumf %8, %9 : vector<8x7xf32>
    %11 = tpu.concatenate %5, %10 in 1 : vector<8x7xf32>, vector<8x7xf32> -> vector<8x14xf32>
    %c0_7 = arith.constant 0 : index
    %c0_8 = arith.constant 0 : index
    %12 = vector.load %arg2[%c0_7, %c0_8] : memref<14x8xf32, #tpu.memory_space<vmem>>, vector<14x8xf32>
    %cst_9 = arith.constant dense<0.000000e+00> : vector<8x8xf32>
    %13 = tpu.matmul %11, %12, %cst_9 {dimension_numbers = #tpu.dot_dimension_numbers<[1], [0], [0], [1], [0, 0, 1, 1], [], []>} : vector<8x14xf32>, vector<14x8xf32>, vector<8x8xf32> -> vector<8x8xf32>
    %14 = math.exp %13 : vector<8x8xf32>
    %c0_10 = arith.constant 0 : index
    %c0_11 = arith.constant 0 : index
    %15 = vector.load %arg3[%c0_10, %c0_11] : memref<8x10xf32, #tpu.memory_space<vmem>>, vector<8x10xf32>
    %cst_12 = arith.constant dense<0.000000e+00> : vector<8x10xf32>
    %16 = tpu.matmul %14, %15, %cst_12 {dimension_numbers = #tpu.dot_dimension_numbers<[1], [0], [0], [1], [0, 0, 1, 1], [], []>} : vector<8x8xf32>, vector<8x10xf32>, vector<8x10xf32> -> vector<8x10xf32>
    %c0_13 = arith.constant 0 : index
    %c0_14 = arith.constant 0 : index
    %17 = vector.load %arg5[%c0_13, %c0_14] : memref<8x10xf32, #tpu.memory_space<vmem>>, vector<8x10xf32>
    tpu.vector_store %arg5[%c0_13, %c0_14], %16 {strides = array<i32>} : memref<8x10xf32, #tpu.memory_space<vmem>>, vector<8x10xf32>,
    %c0_15 = arith.constant 0 : index
    %c0_16 = arith.constant 0 : index
    %18 = vector.load %arg4[%c0_15, %c0_16] : memref<14x15xf32, #tpu.memory_space<vmem>>, vector<14x15xf32>
    %cst_17 = arith.constant dense<0.000000e+00> : vector<8x15xf32>
    %19 = tpu.matmul %11, %18, %cst_17 {dimension_numbers = #tpu.dot_dimension_numbers<[1], [0], [0], [1], [0, 0, 1, 1], [], []>} : vector<8x14xf32>, vector<14x15xf32>, vector<8x15xf32> -> vector<8x15xf32>
    %20 = math.exp %19 : vector<8x15xf32>
    %c0_18 = arith.constant 0 : index
    %c0_19 = arith.constant 0 : index
    %21 = vector.load %arg7[%c0_18, %c0_19] : memref<8x15xf32, #tpu.memory_space<vmem>>, vector<8x15xf32>
    tpu.vector_store %arg7[%c0_18, %c0_19], %20 {strides = array<i32>} : memref<8x15xf32, #tpu.memory_space<vmem>>, vector<8x15xf32>,
    return
  }
  func.func @transform_0(%arg0: i32) -> (i32, i32, i32) {
    %c0_i32 = arith.constant 0 : i32
    %c0_i32_0 = arith.constant 0 : i32
    %c0_i32_1 = arith.constant 0 : i32
    return %arg0, %c0_i32, %c0_i32_0 : i32, i32, i32
  }
  func.func @transform_1(%arg0: i32) -> (i32, i32) {
    %c0_i32 = arith.constant 0 : i32
    %c0_i32_0 = arith.constant 0 : i32
    %c0_i32_1 = arith.constant 0 : i32
    return %c0_i32, %c0_i32_0 : i32, i32
  }
  func.func @transform_2(%arg0: i32) -> (i32, i32) {
    %c0_i32 = arith.constant 0 : i32
    %c0_i32_0 = arith.constant 0 : i32
    %c0_i32_1 = arith.constant 0 : i32
    return %c0_i32, %c0_i32_0 : i32, i32
  }
  func.func @transform_3(%arg0: i32) -> (i32, i32) {
    %c0_i32 = arith.constant 0 : i32
    %c0_i32_0 = arith.constant 0 : i32
    %c0_i32_1 = arith.constant 0 : i32
    return %c0_i32, %c0_i32_0 : i32, i32
  }
  func.func @transform_4(%arg0: i32) -> (i32, i32) {
    %c0_i32 = arith.constant 0 : i32
    %c0_i32_0 = arith.constant 0 : i32
    return %arg0, %c0_i32 : i32, i32
  }
  func.func @transform_5(%arg0: i32) -> (i32, i32) {
    %c0_i32 = arith.constant 0 : i32
    %c0_i32_0 = arith.constant 0 : i32
    return %arg0, %c0_i32 : i32, i32
  }
  func.func @transform_6(%arg0: i32) -> (i32, i32) {
    %c0_i32 = arith.constant 0 : i32
    %c0_i32_0 = arith.constant 0 : i32
    return %arg0, %c0_i32 : i32, i32
  }
}

</mosaic_0001>

<llo_original>
// kernel: tpu_custom_call.1
$region0: #{tpu_custom_call.1}
  #allocation0 [shape = 'u32[]', space=smem, size = 0x4, offset = 0x4, fixed_abs, tag = 'smem constant byte address 0x4 - core index']
  #allocation1 [shape = 'u32[144,128]{1,0:T(1,128)}', space=vmem, size = 0x12000, scoped, tag = 'internal scratch']
  %s0 = inlined_call_operand.vmem [shape: f32[8,7,16], index: 0, kind: input, shape index: {}]
  %s1 = inlined_call_operand.vmem [shape: f32[14,8], index: 1, kind: input, shape index: {}]
  %s2 = inlined_call_operand.vmem [shape: f32[8,10], index: 2, kind: input, shape index: {}]
  %s3 = inlined_call_operand.vmem [shape: f32[14,15], index: 3, kind: input, shape index: {}]
  %s4 = inlined_call_operand.hbm [shape: f32[8,10], index: 4, kind: output, shape index: {0}]
  %s5 = inlined_call_operand.hbm [shape: f32[8,7], index: 5, kind: output, shape index: {1}]
  %s6 = inlined_call_operand.hbm [shape: f32[8,15], index: 6, kind: output, shape index: {2}]
  %7 = xla_tuple %s4, %s5, %s6
  %s8 = sld [smem:[#allocation0]]
  $region42: #{tpu_custom_call.1} parent=0
    _
  %s10 = ssub.s32 1, %s8
  %s11 = scalar_select 0, %s10, %s8
  $region1: #{tpu_custom_call.1} parent=0
    #allocation2 [shape = 'u8[4096]{0}', space=vmem, size = 0x1000, scoped, tag = 'output window, operand 0, single buffered']
    #allocation3 [shape = 's32[1]{0}', space=sflag, size = 0x4, scoped, tag = 'scoped memory for tpu_custom_call.1']
    #allocation4 [shape = 'u8[4096]{0}', space=vmem, size = 0x1000, scoped, tag = 'output window, operand 1, single buffered']
    #allocation5 [shape = 's32[1]{0}', space=sflag, size = 0x4, scoped, tag = 'scoped memory for tpu_custom_call.1']
    #allocation6 [shape = 'u8[4096]{0}', space=vmem, size = 0x1000, scoped, tag = 'output window, operand 2, single buffered']
    %12 = vsyncpa [#allocation3], 0
    %13 = vsyncpa [#allocation5], 0
    // Predicated region
    $region2: #{tpu_custom_call.1} parent=1 // pred_check
      _
    $region3: #{tpu_custom_call.1} parent=1 // pred_check_branch
      %15 = sbr.rel (0) target = $region5
    $region4: #{tpu_custom_call.1} parent=1 // pred_region
      _
    $region5: #{tpu_custom_call.1} parent=1 // pred_fallthru
      _
    // Predicated region
    $region6: #{tpu_custom_call.1} parent=1 // pred_check
      _
    $region7: #{tpu_custom_call.1} parent=1 // pred_check_branch
      %17 = sbr.rel (0) target = $region9
    $region8: #{tpu_custom_call.1} parent=1 // pred_region
      _
    $region9: #{tpu_custom_call.1} parent=1 // pred_fallthru
      _
    // Predicated region
    $region10: #{tpu_custom_call.1} parent=1 // pred_check
      _
    $region11: #{tpu_custom_call.1} parent=1 // pred_check_branch
      %19 = sbr.rel (0) target = $region13
    $region12: #{tpu_custom_call.1} parent=1 // pred_region
      _
    $region13: #{tpu_custom_call.1} parent=1 // pred_fallthru
      _
    // Predicated region
    $region14: #{tpu_custom_call.1} parent=1 // pred_check
      _
    $region15: #{tpu_custom_call.1} parent=1 // pred_check_branch
      %21 = sbr.rel (0) target = $region17
    $region16: #{tpu_custom_call.1} parent=1 // pred_region
      _
    $region17: #{tpu_custom_call.1} parent=1 // pred_fallthru
      _
    %v22 = vld [vmem:[%s0] sm:$0x7f]
    %v23 = vld [vmem:[%s0 + $0x8] sm:$0x7f]
    %v24 = vld [vmem:[%s0 + $0x10] sm:$0x7f]
    %v25 = vld [vmem:[%s0 + $0x18] sm:$0x7f]
    %v26 = vld [vmem:[%s0 + $0x20] sm:$0x7f]
    %v27 = vld [vmem:[%s0 + $0x28] sm:$0x7f]
    %v28 = vld [vmem:[%s0 + $0x30] sm:$0x7f]
    %v29 = vld [vmem:[%s0 + $0x38] sm:$0x7f]
    %vm30 = vcmask 129024
    %v31 = vsel %vm30, %v22, -inf
    %32 = vmax.xlane.f32.xlu0 %v31
    %v33 = vpop.xlane.xlu0 %32
    %v34 = vsel %vm30, %v23, -inf
    %35 = vmax.xlane.f32.xlu0 %v34
    %v36 = vpop.xlane.xlu0 %35
    %v37 = vsel %vm30, %v24, -inf
    %38 = vmax.xlane.f32.xlu0 %v37
    %v39 = vpop.xlane.xlu0 %38
    %v40 = vsel %vm30, %v25, -inf
    %41 = vmax.xlane.f32.xlu0 %v40
    %v42 = vpop.xlane.xlu0 %41
    %v43 = vsel %vm30, %v26, -inf
    %44 = vmax.xlane.f32.xlu0 %v43
    %v45 = vpop.xlane.xlu0 %44
    %v46 = vsel %vm30, %v27, -inf
    %47 = vmax.xlane.f32.xlu0 %v46
    %v48 = vpop.xlane.xlu0 %47
    %v49 = vsel %vm30, %v28, -inf
    %50 = vmax.xlane.f32.xlu0 %v49
    %v51 = vpop.xlane.xlu0 %50
    %v52 = vsel %vm30, %v29, -inf
    %53 = vmax.xlane.f32.xlu0 %v52
    %v54 = vpop.xlane.xlu0 %53
    %v63 = vlaneseq
    %v64 = vand.u32 %v63, 127
    %v65 = vlaneseq
    %v66 = vshrl.u32 %v65, 7
    %v67 = vsub.s32 %v64, %v66
    %v68 = vrot.slane %v33, %v67
    %v69 = vlaneseq
    %v70 = vshrl.u32 %v69, 7
    %v71 = vsub.s32 %v64, %v70
    %v72 = vrot.slane %v36, %v71
    %v73 = vlaneseq
    %v74 = vshrl.u32 %v73, 7
    %v75 = vsub.s32 %v64, %v74
    %v76 = vrot.slane %v39, %v75
    %v77 = vlaneseq
    %v78 = vshrl.u32 %v77, 7
    %v79 = vsub.s32 %v64, %v78
    %v80 = vrot.slane %v42, %v79
    %v81 = vlaneseq
    %v82 = vshrl.u32 %v81, 7
    %v83 = vsub.s32 %v64, %v82
    %v84 = vrot.slane %v45, %v83
    %v85 = vlaneseq
    %v86 = vshrl.u32 %v85, 7
    %v87 = vsub.s32 %v64, %v86
    %v88 = vrot.slane %v48, %v87
    %v89 = vlaneseq
    %v90 = vshrl.u32 %v89, 7
    %v91 = vsub.s32 %v64, %v90
    %v92 = vrot.slane %v51, %v91
    %v93 = vlaneseq
    %v94 = vshrl.u32 %v93, 7
    %v95 = vsub.s32 %v64, %v94
    %v96 = vrot.slane %v54, %v95
    %vm97 = vcmask 1041409
    %v98 = vsel %vm97, %v72, %v68
    %vm99 = vcmask 1042434
    %v100 = vsel %vm99, %v76, %v98
    %vm101 = vcmask 1043459
    %v102 = vsel %vm101, %v80, %v100
    %vm103 = vcmask 1044484
    %v104 = vsel %vm103, %v84, %v102
    %vm105 = vcmask 1045509
    %v106 = vsel %vm105, %v88, %v104
    %vm107 = vcmask 1046534
    %v108 = vsel %vm107, %v92, %v106
    %vm109 = vcmask 1047559
    %v110 = vsel %vm109, %v96, %v108
    %vm112 = vcmask 56320
    %113 = vst.msk [vmem:[#allocation4] sm:$0xff] %vm112, %v110
    %v114 = vlog2.pop %v33
    %v115 = vmul.f32 %v114, 0.6931472
    %v116 = vlog2.pop %v36
    %v117 = vmul.f32 %v116, 0.6931472
    %v118 = vlog2.pop %v39
    %v119 = vmul.f32 %v118, 0.6931472
    %v120 = vlog2.pop %v42
    %v121 = vmul.f32 %v120, 0.6931472
    %v122 = vlog2.pop %v45
    %v123 = vmul.f32 %v122, 0.6931472
    %v124 = vlog2.pop %v48
    %v125 = vmul.f32 %v124, 0.6931472
    %v126 = vlog2.pop %v51
    %v127 = vmul.f32 %v126, 0.6931472
    %v128 = vlog2.pop %v54
    %v129 = vmul.f32 %v128, 0.6931472
    %v130 = vmax.f32 %v115, -1e+30
    %v131 = vmax.f32 %v117, -1e+30
    %v132 = vmax.f32 %v119, -1e+30
    %v133 = vmax.f32 %v121, -1e+30
    %v134 = vmax.f32 %v123, -1e+30
    %v135 = vmax.f32 %v125, -1e+30
    %v136 = vmax.f32 %v127, -1e+30
    %v137 = vmax.f32 %v129, -1e+30
    %v138 = vsub.f32 1.0, %v33
    %v139 = vsub.f32 1.0, %v36
    %v140 = vsub.f32 1.0, %v39
    %v141 = vsub.f32 1.0, %v42
    %v142 = vsub.f32 1.0, %v45
    %v143 = vsub.f32 1.0, %v48
    %v144 = vsub.f32 1.0, %v51
    %v145 = vsub.f32 1.0, %v54
    %v146 = vlog2.pop %v138
    %v147 = vmul.f32 %v146, 0.6931472
    %v148 = vlog2.pop %v139
    %v149 = vmul.f32 %v148, 0.6931472
    %v150 = vlog2.pop %v140
    %v151 = vmul.f32 %v150, 0.6931472
    %v152 = vlog2.pop %v141
    %v153 = vmul.f32 %v152, 0.6931472
    %v154 = vlog2.pop %v142
    %v155 = vmul.f32 %v154, 0.6931472
    %v156 = vlog2.pop %v143
    %v157 = vmul.f32 %v156, 0.6931472
    %v158 = vlog2.pop %v144
    %v159 = vmul.f32 %v158, 0.6931472
    %v160 = vlog2.pop %v145
    %v161 = vmul.f32 %v160, 0.6931472
    %v162 = vmax.f32 %v147, -1e+30
    %v163 = vmax.f32 %v149, -1e+30
    %v164 = vmax.f32 %v151, -1e+30
    %v165 = vmax.f32 %v153, -1e+30
    %v166 = vmax.f32 %v155, -1e+30
    %v167 = vmax.f32 %v157, -1e+30
    %v168 = vmax.f32 %v159, -1e+30
    %v169 = vmax.f32 %v161, -1e+30
    %v178 = vlaneseq
    %v179 = vshrl.u32 %v178, 7
    %v180 = vsub.s32 %v64, %v179
    %v181 = vrot.slane %v130, %v180
    %v182 = vlaneseq
    %v183 = vshrl.u32 %v182, 7
    %v184 = vsub.s32 %v64, %v183
    %v185 = vrot.slane %v131, %v184
    %v186 = vlaneseq
    %v187 = vshrl.u32 %v186, 7
    %v188 = vsub.s32 %v64, %v187
    %v189 = vrot.slane %v132, %v188
    %v190 = vlaneseq
    %v191 = vshrl.u32 %v190, 7
    %v192 = vsub.s32 %v64, %v191
    %v193 = vrot.slane %v133, %v192
    %v194 = vlaneseq
    %v195 = vshrl.u32 %v194, 7
    %v196 = vsub.s32 %v64, %v195
    %v197 = vrot.slane %v134, %v196
    %v198 = vlaneseq
    %v199 = vshrl.u32 %v198, 7
    %v200 = vsub.s32 %v64, %v199
    %v201 = vrot.slane %v135, %v200
    %v202 = vlaneseq
    %v203 = vshrl.u32 %v202, 7
    %v204 = vsub.s32 %v64, %v203
    %v205 = vrot.slane %v136, %v204
    %v206 = vlaneseq
    %v207 = vshrl.u32 %v206, 7
    %v208 = vsub.s32 %v64, %v207
    %v209 = vrot.slane %v137, %v208
    %v210 = vsel %vm97, %v185, %v181
    %v211 = vsel %vm99, %v189, %v210
    %v212 = vsel %vm101, %v193, %v211
    %v213 = vsel %vm103, %v197, %v212
    %v214 = vsel %vm105, %v201, %v213
    %v215 = vsel %vm107, %v205, %v214
    %v216 = vsel %vm109, %v209, %v215
    %v226 = vadd.s32 %v64, 4294967289
    %v227 = vlaneseq
    %v228 = vshrl.u32 %v227, 7
    %v229 = vsub.s32 %v226, %v228
    %v230 = vrot.slane %v162, %v229
    %v231 = vlaneseq
    %v232 = vshrl.u32 %v231, 7
    %v233 = vsub.s32 %v226, %v232
    %v234 = vrot.slane %v163, %v233
    %v235 = vlaneseq
    %v236 = vshrl.u32 %v235, 7
    %v237 = vsub.s32 %v226, %v236
    %v238 = vrot.slane %v164, %v237
    %v239 = vlaneseq
    %v240 = vshrl.u32 %v239, 7
    %v241 = vsub.s32 %v226, %v240
    %v242 = vrot.slane %v165, %v241
    %v243 = vlaneseq
    %v244 = vshrl.u32 %v243, 7
    %v245 = vsub.s32 %v226, %v244
    %v246 = vrot.slane %v166, %v245
    %v247 = vlaneseq
    %v248 = vshrl.u32 %v247, 7
    %v249 = vsub.s32 %v226, %v248
    %v250 = vrot.slane %v167, %v249
    %v251 = vlaneseq
    %v252 = vshrl.u32 %v251, 7
    %v253 = vsub.s32 %v226, %v252
    %v254 = vrot.slane %v168, %v253
    %v255 = vlaneseq
    %v256 = vshrl.u32 %v255, 7
    %v257 = vsub.s32 %v226, %v256
    %v258 = vrot.slane %v169, %v257
    %v259 = vsel %vm97, %v234, %v230
    %v260 = vsel %vm99, %v238, %v259
    %v261 = vsel %vm101, %v242, %v260
    %v262 = vsel %vm103, %v246, %v261
    %v263 = vsel %vm105, %v250, %v262
    %v264 = vsel %vm107, %v254, %v263
    %v265 = vsel %vm109, %v258, %v264
    %v267 = vsel %vm112, %v216, %v265
    %v268 = vld [vmem:[%s1] sm:$0xff]
    %v269 = vld [vmem:[%s1 + $0x8] sm:$0x3f]
    %vm270 = vcmask 113664
    %v272 = vsel %vm270, %v267, 0
    %vm274 = vcmask 1045504
    %v276 = vsel %vm274, %v269, 0
    %278 = vmatprep.subr.mxu0 0.0
    %279 = vmatpush1.msra.mxu0 0.0
    %280 = vmatprep.subr.mxu0 0.0
    %281 = vmatpush1.msra.mxu0 0.0
    %282 = vmatprep.subr.mxu0 0.0
    %283 = vmatpush1.msra.mxu0 0.0
    %284 = vmatprep.subr.mxu0 0.0
    %285 = vmatpush1.msra.mxu0 0.0
    %286 = vmatprep.subr.mxu0 0.0
    %287 = vmatpush1.msra.mxu0 0.0
    %288 = vmatprep.subr.mxu0 0.0
    %289 = vmatpush1.msra.mxu0 0.0
    %290 = vmatprep.subr.mxu0 0.0
    %291 = vmatpush1.msra.mxu0 0.0
    %292 = vmatprep.subr.mxu0 0.0
    %293 = vmatpush1.msra.mxu0 0.0
    %294 = vmatprep.subr.mxu0 0.0
    %295 = vmatpush1.msra.mxu0 0.0
    %296 = vmatprep.subr.mxu0 0.0
    %297 = vmatpush1.msra.mxu0 0.0
    %298 = vmatprep.subr.mxu0 0.0
    %299 = vmatpush1.msra.mxu0 0.0
    %300 = vmatprep.subr.mxu0 0.0
    %301 = vmatpush1.msra.mxu0 0.0
    %302 = vmatprep.subr.mxu0 0.0
    %303 = vmatpush1.msra.mxu0 0.0
    %304 = vmatprep.subr.mxu0 0.0
    %305 = vmatpush1.msra.mxu0 0.0
    %306 = vmatprep.subr.mxu0 0.0
    %307 = vmatpush1.msra.mxu0 %v276
    %308 = vmatprep.subr.mxu0 0.0
    %309 = vmatpush1.msra.mxu0 %v268
    %310 = vmatprep.subr.mxu0 0.0
    %311 = vmatpush2.msra.mxu0 0.0
    %312 = vmatprep.subr.mxu0 0.0
    %313 = vmatpush2.msra.mxu0 0.0
    %314 = vmatprep.subr.mxu0 0.0
    %315 = vmatpush2.msra.mxu0 0.0
    %316 = vmatprep.subr.mxu0 0.0
    %317 = vmatpush2.msra.mxu0 0.0
    %318 = vmatprep.subr.mxu0 0.0
    %319 = vmatpush2.msra.mxu0 0.0
    %320 = vmatprep.subr.mxu0 0.0
    %321 = vmatpush2.msra.mxu0 0.0
    %322 = vmatprep.subr.mxu0 0.0
    %323 = vmatpush2.msra.mxu0 0.0
    %324 = vmatprep.subr.mxu0 0.0
    %325 = vmatpush2.msra.mxu0 0.0
    %326 = vmatprep.subr.mxu0 0.0
    %327 = vmatpush2.msra.mxu0 0.0
    %328 = vmatprep.subr.mxu0 0.0
    %329 = vmatpush2.msra.mxu0 0.0
    %330 = vmatprep.subr.mxu0 0.0
    %331 = vmatpush2.msra.mxu0 0.0
    %332 = vmatprep.subr.mxu0 0.0
    %333 = vmatpush2.msra.mxu0 0.0
    %334 = vmatprep.subr.mxu0 0.0
    %335 = vmatpush2.msra.mxu0 0.0
    %336 = vmatprep.subr.mxu0 0.0
    %337 = vmatpush2.msra.mxu0 0.0
    %338 = vmatprep.subr.mxu0 0.0
    %339 = vmatpush2.msra.mxu0 0.0
    %340 = vmatprep.subr.mxu0 0.0
    %341 = vmatpush2.msra.mxu0 0.0
    %342 = vmatprep.mubr.f32.mxu0 0.0
    %343 = vmatmul.mubr.f32.gmra.mxu0 %v272
    %v344 = vpop.f32.mrf.mxu0
    %v345 = vadd.f32 0.0, %v344
    %v346 = vpop.f32.mrf.mxu0
    %347 = vdwg.mxu0
    %v348 = vmul.f32 %v345, 1.442695
    %v349 = vpow.pop %v348
    %v350 = vld [vmem:[%s2] sm:$0xff]
    %vm351 = vcmask 64512
    %v353 = vsel %vm351, %v349, 0
    %355 = vmatprep.subr.mxu0 0.0
    %356 = vmatpush1.msra.mxu0 0.0
    %357 = vmatprep.subr.mxu0 0.0
    %358 = vmatpush1.msra.mxu0 0.0
    %359 = vmatprep.subr.mxu0 0.0
    %360 = vmatpush1.msra.mxu0 0.0
    %361 = vmatprep.subr.mxu0 0.0
    %362 = vmatpush1.msra.mxu0 0.0
    %363 = vmatprep.subr.mxu0 0.0
    %364 = vmatpush1.msra.mxu0 0.0
    %365 = vmatprep.subr.mxu0 0.0
    %366 = vmatpush1.msra.mxu0 0.0
    %367 = vmatprep.subr.mxu0 0.0
    %368 = vmatpush1.msra.mxu0 0.0
    %369 = vmatprep.subr.mxu0 0.0
    %370 = vmatpush1.msra.mxu0 0.0
    %371 = vmatprep.subr.mxu0 0.0
    %372 = vmatpush1.msra.mxu0 0.0
    %373 = vmatprep.subr.mxu0 0.0
    %374 = vmatpush1.msra.mxu0 0.0
    %375 = vmatprep.subr.mxu0 0.0
    %376 = vmatpush1.msra.mxu0 0.0
    %377 = vmatprep.subr.mxu0 0.0
    %378 = vmatpush1.msra.mxu0 0.0
    %379 = vmatprep.subr.mxu0 0.0
    %380 = vmatpush1.msra.mxu0 0.0
    %381 = vmatprep.subr.mxu0 0.0
    %382 = vmatpush1.msra.mxu0 0.0
    %383 = vmatprep.subr.mxu0 0.0
    %384 = vmatpush1.msra.mxu0 0.0
    %385 = vmatprep.subr.mxu0 0.0
    %386 = vmatpush1.msra.mxu0 %v350
    %387 = vmatprep.subr.mxu0 0.0
    %388 = vmatpush2.msra.mxu0 0.0
    %389 = vmatprep.subr.mxu0 0.0
    %390 = vmatpush2.msra.mxu0 0.0
    %391 = vmatprep.subr.mxu0 0.0
    %392 = vmatpush2.msra.mxu0 0.0
    %393 = vmatprep.subr.mxu0 0.0
    %394 = vmatpush2.msra.mxu0 0.0
    %395 = vmatprep.subr.mxu0 0.0
    %396 = vmatpush2.msra.mxu0 0.0
    %397 = vmatprep.subr.mxu0 0.0
    %398 = vmatpush2.msra.mxu0 0.0
    %399 = vmatprep.subr.mxu0 0.0
    %400 = vmatpush2.msra.mxu0 0.0
    %401 = vmatprep.subr.mxu0 0.0
    %402 = vmatpush2.msra.mxu0 0.0
    %403 = vmatprep.subr.mxu0 0.0
    %404 = vmatpush2.msra.mxu0 0.0
    %405 = vmatprep.subr.mxu0 0.0
    %406 = vmatpush2.msra.mxu0 0.0
    %407 = vmatprep.subr.mxu0 0.0
    %408 = vmatpush2.msra.mxu0 0.0
    %409 = vmatprep.subr.mxu0 0.0
    %410 = vmatpush2.msra.mxu0 0.0
    %411 = vmatprep.subr.mxu0 0.0
    %412 = vmatpush2.msra.mxu0 0.0
    %413 = vmatprep.subr.mxu0 0.0
    %414 = vmatpush2.msra.mxu0 0.0
    %415 = vmatprep.subr.mxu0 0.0
    %416 = vmatpush2.msra.mxu0 0.0
    %417 = vmatprep.subr.mxu0 0.0
    %418 = vmatpush2.msra.mxu0 0.0
    %419 = vmatprep.mubr.f32.mxu0 0.0
    %420 = vmatmul.mubr.f32.gmra.mxu0 %v353
    %v421 = vpop.f32.mrf.mxu0
    %v422 = vadd.f32 0.0, %v421
    %v423 = vpop.f32.mrf.mxu0
    %424 = vdwg.mxu0
    %vm425 = vcmask 80896
    %426 = vst.msk [vmem:[#allocation2] sm:$0xff] %vm425, %v422
    %v427 = vld [vmem:[%s3] sm:$0xff]
    %v428 = vld [vmem:[%s3 + $0x8] sm:$0x3f]
    %v430 = vsel %vm274, %v428, 0
    %432 = vmatprep.subr.mxu0 0.0
    %433 = vmatpush1.msra.mxu0 0.0
    %434 = vmatprep.subr.mxu0 0.0
    %435 = vmatpush1.msra.mxu0 0.0
    %436 = vmatprep.subr.mxu0 0.0
    %437 = vmatpush1.msra.mxu0 0.0
    %438 = vmatprep.subr.mxu0 0.0
    %439 = vmatpush1.msra.mxu0 0.0
    %440 = vmatprep.subr.mxu0 0.0
    %441 = vmatpush1.msra.mxu0 0.0
    %442 = vmatprep.subr.mxu0 0.0
    %443 = vmatpush1.msra.mxu0 0.0
    %444 = vmatprep.subr.mxu0 0.0
    %445 = vmatpush1.msra.mxu0 0.0
    %446 = vmatprep.subr.mxu0 0.0
    %447 = vmatpush1.msra.mxu0 0.0
    %448 = vmatprep.subr.mxu0 0.0
    %449 = vmatpush1.msra.mxu0 0.0
    %450 = vmatprep.subr.mxu0 0.0
    %451 = vmatpush1.msra.mxu0 0.0
    %452 = vmatprep.subr.mxu0 0.0
    %453 = vmatpush1.msra.mxu0 0.0
    %454 = vmatprep.subr.mxu0 0.0
    %455 = vmatpush1.msra.mxu0 0.0
    %456 = vmatprep.subr.mxu0 0.0
    %457 = vmatpush1.msra.mxu0 0.0
    %458 = vmatprep.subr.mxu0 0.0
    %459 = vmatpush1.msra.mxu0 0.0
    %460 = vmatprep.subr.mxu0 0.0
    %461 = vmatpush1.msra.mxu0 %v430
    %462 = vmatprep.subr.mxu0 0.0
    %463 = vmatpush1.msra.mxu0 %v427
    %464 = vmatprep.subr.mxu0 0.0
    %465 = vmatpush2.msra.mxu0 0.0
    %466 = vmatprep.subr.mxu0 0.0
    %467 = vmatpush2.msra.mxu0 0.0
    %468 = vmatprep.subr.mxu0 0.0
    %469 = vmatpush2.msra.mxu0 0.0
    %470 = vmatprep.subr.mxu0 0.0
    %471 = vmatpush2.msra.mxu0 0.0
    %472 = vmatprep.subr.mxu0 0.0
    %473 = vmatpush2.msra.mxu0 0.0
    %474 = vmatprep.subr.mxu0 0.0
    %475 = vmatpush2.msra.mxu0 0.0
    %476 = vmatprep.subr.mxu0 0.0
    %477 = vmatpush2.msra.mxu0 0.0
    %478 = vmatprep.subr.mxu0 0.0
    %479 = vmatpush2.msra.mxu0 0.0
    %480 = vmatprep.subr.mxu0 0.0
    %481 = vmatpush2.msra.mxu0 0.0
    %482 = vmatprep.subr.mxu0 0.0
    %483 = vmatpush2.msra.mxu0 0.0
    %484 = vmatprep.subr.mxu0 0.0
    %485 = vmatpush2.msra.mxu0 0.0
    %486 = vmatprep.subr.mxu0 0.0
    %487 = vmatpush2.msra.mxu0 0.0
    %488 = vmatprep.subr.mxu0 0.0
    %489 = vmatpush2.msra.mxu0 0.0
    %490 = vmatprep.subr.mxu0 0.0
    %491 = vmatpush2.msra.mxu0 0.0
    %492 = vmatprep.subr.mxu0 0.0
    %493 = vmatpush2.msra.mxu0 0.0
    %494 = vmatprep.subr.mxu0 0.0
    %495 = vmatpush2.msra.mxu0 0.0
    %496 = vmatprep.mubr.f32.mxu0 0.0
    %497 = vmatmul.mubr.f32.gmra.mxu0 %v272
    %v498 = vpop.f32.mrf.mxu0
    %v499 = vadd.f32 0.0, %v498
    %v500 = vpop.f32.mrf.mxu0
    %501 = vdwg.mxu0
    %v502 = vmul.f32 %v499, 1.442695
    %v503 = vpow.pop %v502
    %vm504 = vcmask 121856
    %505 = vst.msk [vmem:[#allocation6] sm:$0xff] %vm504, %v503
    // Predicated region
    $region18: #{tpu_custom_call.1} parent=1 // pred_check
      _
    $region19: #{tpu_custom_call.1} parent=1 // pred_check_branch
      %507 = sbr.rel (0) target = $region21
    $region20: #{tpu_custom_call.1} parent=1 // pred_region
      %s509 = ssub.s32 128, 128
      %510 = vsyncadd [#allocation3], %s509
      %s512 = sshll.u32 [#allocation2], 4
      %s513 = int_to_ptr.vmem [resolvable:$true] %s512
      %515 = dma.vmem_to_hbm [thread:$0]  %s513, 128, %s4, [#allocation3]
    $region21: #{tpu_custom_call.1} parent=1 // pred_fallthru
      _
    // Predicated region
    $region22: #{tpu_custom_call.1} parent=1 // pred_check
      _
    $region23: #{tpu_custom_call.1} parent=1 // pred_check_branch
      %517 = sbr.rel (0) target = $region25
    $region24: #{tpu_custom_call.1} parent=1 // pred_region
      %s519 = ssub.s32 128, 128
      %520 = vsyncadd [#allocation5], %s519
      %s522 = sshll.u32 [#allocation4], 4
      %s523 = int_to_ptr.vmem [resolvable:$true] %s522
      %525 = dma.vmem_to_hbm [thread:$0]  %s523, 128, %s5, [#allocation5]
    $region25: #{tpu_custom_call.1} parent=1 // pred_fallthru
      _
    // Predicated region
    $region26: #{tpu_custom_call.1} parent=1 // pred_check
      _
    $region27: #{tpu_custom_call.1} parent=1 // pred_check_branch
      %527 = sbr.rel (0) target = $region29
    $region28: #{tpu_custom_call.1} parent=1 // pred_region
      %s529 = ssub.s32 128, 128
      %530 = vsyncadd [#allocation5], %s529
      %s532 = sshll.u32 [#allocation6], 4
      %s533 = int_to_ptr.vmem [resolvable:$true] %s532
      %535 = dma.vmem_to_hbm [thread:$0]  %s533, 128, %s6, [#allocation5]
    $region29: #{tpu_custom_call.1} parent=1 // pred_fallthru
      _
    // Predicated region
    $region30: #{tpu_custom_call.1} parent=1 // pred_check
      _
    $region31: #{tpu_custom_call.1} parent=1 // pred_check_branch
      %537 = sbr.rel (0) target = $region33
    $region32: #{tpu_custom_call.1} parent=1 // pred_region
      %538 = dma.done [#allocation3], 128
    $region33: #{tpu_custom_call.1} parent=1 // pred_fallthru
      _
    // Predicated region
    $region34: #{tpu_custom_call.1} parent=1 // pred_check
      _
    $region35: #{tpu_custom_call.1} parent=1 // pred_check_branch
      %540 = sbr.rel (0) target = $region37
    $region36: #{tpu_custom_call.1} parent=1 // pred_region
      %541 = dma.done [#allocation5], 128
    $region37: #{tpu_custom_call.1} parent=1 // pred_fallthru
      _
    // Predicated region
    $region38: #{tpu_custom_call.1} parent=1 // pred_check
      _
    $region39: #{tpu_custom_call.1} parent=1 // pred_check_branch
      %543 = sbr.rel (0) target = $region41
    $region40: #{tpu_custom_call.1} parent=1 // pred_region
      %544 = dma.done [#allocation5], 128
    $region41: #{tpu_custom_call.1} parent=1 // pred_fallthru
      _
    %545 = vsyncpa [#allocation3], 1
    %546 = vsyncpa [#allocation5], 1

</llo_original>
